<compile_context>
chip_gen: v7x
topology: tpu7x:2x2x1
jax: 0.10.0
libtpu: 0.0.40
codegen_flags: <defaults>
</compile_context>

<pallas_src>
import jax
import jax.numpy as jnp
from jax.experimental import pallas as pl
from jax.experimental.pallas import tpu as pltpu

LANE = 128


def _round_up(a, b):
    return (a + b - 1) // b * b


def _make_kernel(C, tco, n_co, Nb, use_mxu):
    def kernel(x_ref, w_ref, b_ref, o_ref):
        # x_ref: (Nb, C,   t_hw)  spatial tile of Nb images, channels on sublanes
        # w_ref: (tco, C)         Cout-tile of the 1x1-conv weight (Cout, Cin)
        # b_ref: (tco, 1)         bias tile (f32), broadcasts along lanes
        # o_ref: (Nb, tco, t_hw)
        w = w_ref[...]
        bias = b_ref[...]  # (tco, 1) f32
        if n_co > 1:
            row0 = pl.multiple_of(pl.program_id(0) * tco, 8)
        for b in range(Nb):  # static, small (<= 8)
            x = x_ref[b]  # (C, t_hw)
            if use_mxu:
                # y = W @ x on the MXU, f32 accumulation.
                y = jnp.dot(w, x, preferred_element_type=jnp.float32)
            else:
                # C < 8: a few broadcast FMAs on the VPU; accumulator stays
                # within ~16 vregs at t_hw <= 2048.
                wf = w.astype(jnp.float32)
                xf = x.astype(jnp.float32)
                y = wf[:, 0:1] * xf[0:1, :]
                for c in range(1, C):
                    y = y + wf[:, c:c + 1] * xf[c:c + 1, :]
            if n_co > 1:
                res = x_ref[b, pl.ds(row0, tco), :]  # residual rows of this Cout tile
            else:
                res = x
            o_ref[b] = (y + bias + res.astype(jnp.float32)).astype(o_ref.dtype)

    return kernel


def residual_connection(x_nchw, weight, bias, *, target_tile=2048):
    """out = Conv2d_1x1(x) + x, input/output in NCHW (PyTorch convention)."""
    N, C, H, W = x_nchw.shape
    Cout, Cin, kh, kw = weight.shape
    assert (kh, kw) == (1, 1) and Cin == C and Cout == C

    HW = H * W
    itemsize = jnp.dtype(x_nchw.dtype).itemsize

    # ---- generation-aware VMEM sizing --------------------------------------
    try:
        vmem_cap = int(pltpu.get_tpu_info().vmem_capacity_bytes)
    except Exception:
        vmem_cap = 64 * 1024 * 1024  # conservative default
    if vmem_cap >= 96 * 1024 * 1024:      # v5e / v6e: 128 MiB VMEM
        vmem_limit = 64 * 1024 * 1024
        vmem_budget = 48 * 1024 * 1024
    else:                                 # v7x: 64 MiB VMEM per TensorCore
        vmem_limit = 48 * 1024 * 1024
        vmem_budget = 34 * 1024 * 1024

    io_bufs = 2  # Pallas double-buffers pipelined inputs/outputs
    w_bufs = 2   # resident (constant index_map) weight is still double-buffered

    # ---- Cout tiling: bound weight VMEM independently of C -----------------
    weight_cap = vmem_budget // 3
    if w_bufs * C * C * itemsize <= weight_cap or C % 8 != 0:
        tco, n_co = C, 1
    else:
        tco = 8
        d = 8
        while d < C:
            if C % d == 0 and w_bufs * d * C * itemsize <= weight_cap:
                tco = d
            d += 8
        n_co = C // tco

    use_mxu = C >= 8

    # ---- spatial tile: multiple of 128 lanes, as large as the budget allows
    def fits(nb, t):
        return (io_bufs * nb * t * (C + tco) * itemsize
                + w_bufs * tco * C * itemsize
                + 2 * tco * 4) <= vmem_budget

    t_hw = _round_up(min(HW, target_tile), LANE)
    while t_hw > LANE and not fits(1, t_hw):
        t_hw = max(LANE, _round_up(t_hw // 2, LANE))

    # Keep >= 2 parallel spatial tiles for single-image calls so both
    # TensorCores of a 2-TC chip (v7x) get work.
    if N == 1 and n_co == 1 and HW > 2 * LANE and pl.cdiv(HW, t_hw) < 2:
        t_hw = max(LANE, _round_up(pl.cdiv(HW, 2), LANE))

    n_hw = pl.cdiv(HW, t_hw)

    # ---- fold images into one block when per-step work is tiny -------------
    Nb = 1
    step_bytes = C * t_hw * itemsize
    if N > 1 and n_hw == 1 and step_bytes < (256 << 10):
        Nb = min(N, 8, max(1, (1 << 20) // max(step_bytes, 1)))
        while Nb > 1 and not fits(Nb, t_hw):
            Nb = max(1, Nb // 2)
    n_b = pl.cdiv(N, Nb)

    # Native NCHW: flatten spatial dims only (no transpose, no padding).
    x3 = x_nchw.reshape(N, C, HW)
    w2d = weight.reshape(Cout, Cin).astype(x3.dtype)   # (Cout, Cin); y = W @ x
    b2d = bias.reshape(C, 1).astype(jnp.float32)       # broadcasts along lanes

    kernel = _make_kernel(C, tco, n_co, Nb, use_mxu)
    grid = (n_co, n_b, n_hw)

    out3 = pl.pallas_call(
        kernel,
        out_shape=jax.ShapeDtypeStruct((N, C, HW), x3.dtype),
        grid_spec=pltpu.PrefetchScalarGridSpec(
            num_scalar_prefetch=0,
            grid=grid,
            in_specs=[
                pl.BlockSpec((Nb, C, t_hw), lambda co, b, j: (b, 0, j)),
                pl.BlockSpec((tco, C), lambda co, b, j: (co, 0)),   # resident weight
                pl.BlockSpec((tco, 1), lambda co, b, j: (co, 0)),   # resident bias
            ],
            out_specs=pl.BlockSpec((Nb, tco, t_hw), lambda co, b, j: (b, co, j)),
        ),
        compiler_params=pltpu.CompilerParams(
            dimension_semantics=("parallel", "parallel", "parallel"),
            vmem_limit_bytes=vmem_limit,
        ),
    )(x3, w2d, b2d)

    return out3.reshape(N, C, H, W)


if __name__ == "__main__":
    key = jax.random.PRNGKey(0)
    kx, kw, kb = jax.random.split(key, 3)

    N, C, H, W = 2, 4, 16, 16
    x = jax.random.normal(kx, (N, C, H, W), dtype=jnp.float32)
    # Deterministic synthetic params for Conv2d(C, C, 1): weight (C, C, 1, 1), bias (C,)
    weight = jax.random.normal(kw, (C, C, 1, 1), dtype=jnp.float32) * 0.1
    bias = jax.random.normal(kb, (C,), dtype=jnp.float32) * 0.1

    out = residual_connection(x, weight, bias)
    out = jax.block_until_ready(out)

    # Pure-JAX reference of the same semantics.
    ref = (
        jnp.einsum("oi,nihw->nohw", weight.reshape(C, C), x)
        + bias.reshape(1, C, 1, 1)
        + x
    )
    assert out.shape == (N, C, H, W)
    assert jnp.allclose(out, ref, atol=1e-5, rtol=1e-5)

    print("KERNEL_OK")
</pallas_src>

<mosaic_0001>
module attributes {stable_mosaic.version = 11 : i64} {
  func.func @kernel(%arg0: i32, %arg1: i32, %arg2: i32, %arg3: memref<2x4x256xf32, #tpu.memory_space<vmem>>, %arg4: memref<4x4xf32, #tpu.memory_space<vmem>>, %arg5: memref<4x1xf32, #tpu.memory_space<vmem>>, %arg6: memref<2x4x256xf32, #tpu.memory_space<vmem>>) attributes {dimension_semantics = [#tpu.dimension_semantics<parallel>, #tpu.dimension_semantics<parallel>, #tpu.dimension_semantics<parallel>], iteration_bounds = array<i64: 1, 1, 1>, scalar_prefetch = 0 : i64, scratch_operands = 0 : i64, tpu.core_type = #tpu.core_type<tc>, window_params = [{transform_indices = @transform_0, window_bounds = array<i64: 2, 4, 256>}, {transform_indices = @transform_1, window_bounds = array<i64: 4, 4>}, {transform_indices = @transform_2, window_bounds = array<i64: 4, 1>}, {transform_indices = @transform_3, window_bounds = array<i64: 2, 4, 256>}]} {
    %c0 = arith.constant 0 : index
    %c0_0 = arith.constant 0 : index
    %0 = vector.load %arg4[%c0, %c0_0] : memref<4x4xf32, #tpu.memory_space<vmem>>, vector<4x4xf32>
    %c0_1 = arith.constant 0 : index
    %c0_2 = arith.constant 0 : index
    %1 = vector.load %arg5[%c0_1, %c0_2] : memref<4x1xf32, #tpu.memory_space<vmem>>, vector<4x1xf32>
    %c0_3 = arith.constant 0 : index
    %c0_4 = arith.constant 0 : index
    %c0_5 = arith.constant 0 : index
    %2 = vector.load %arg3[%c0_3, %c0_4, %c0_5] : memref<2x4x256xf32, #tpu.memory_space<vmem>>, vector<1x4x256xf32>
    %3 = vector.shape_cast %2 : vector<1x4x256xf32> to vector<4x256xf32>
    %4 = vector.extract_strided_slice %0 {offsets = [0, 0], sizes = [4, 1], strides = [1, 1]} : vector<4x4xf32> to vector<4x1xf32>
    %5 = vector.extract_strided_slice %3 {offsets = [0, 0], sizes = [1, 256], strides = [1, 1]} : vector<4x256xf32> to vector<1x256xf32>
    %6 = vector.broadcast %4 : vector<4x1xf32> to vector<4x256xf32>
    %7 = vector.broadcast %5 : vector<1x256xf32> to vector<4x256xf32>
    %8 = arith.mulf %6, %7 : vector<4x256xf32>
    %9 = vector.extract_strided_slice %0 {offsets = [0, 1], sizes = [4, 1], strides = [1, 1]} : vector<4x4xf32> to vector<4x1xf32>
    %10 = vector.extract_strided_slice %3 {offsets = [1, 0], sizes = [1, 256], strides = [1, 1]} : vector<4x256xf32> to vector<1x256xf32>
    %11 = vector.broadcast %9 : vector<4x1xf32> to vector<4x256xf32>
    %12 = vector.broadcast %10 : vector<1x256xf32> to vector<4x256xf32>
    %13 = arith.mulf %11, %12 : vector<4x256xf32>
    %14 = arith.addf %8, %13 : vector<4x256xf32>
    %15 = vector.extract_strided_slice %0 {offsets = [0, 2], sizes = [4, 1], strides = [1, 1]} : vector<4x4xf32> to vector<4x1xf32>
    %16 = vector.extract_strided_slice %3 {offsets = [2, 0], sizes = [1, 256], strides = [1, 1]} : vector<4x256xf32> to vector<1x256xf32>
    %17 = vector.broadcast %15 : vector<4x1xf32> to vector<4x256xf32>
    %18 = vector.broadcast %16 : vector<1x256xf32> to vector<4x256xf32>
    %19 = arith.mulf %17, %18 : vector<4x256xf32>
    %20 = arith.addf %14, %19 : vector<4x256xf32>
    %21 = vector.extract_strided_slice %0 {offsets = [0, 3], sizes = [4, 1], strides = [1, 1]} : vector<4x4xf32> to vector<4x1xf32>
    %22 = vector.extract_strided_slice %3 {offsets = [3, 0], sizes = [1, 256], strides = [1, 1]} : vector<4x256xf32> to vector<1x256xf32>
    %23 = vector.broadcast %21 : vector<4x1xf32> to vector<4x256xf32>
    %24 = vector.broadcast %22 : vector<1x256xf32> to vector<4x256xf32>
    %25 = arith.mulf %23, %24 : vector<4x256xf32>
    %26 = arith.addf %20, %25 : vector<4x256xf32>
    %27 = vector.broadcast %1 : vector<4x1xf32> to vector<4x256xf32>
    %28 = arith.addf %26, %27 : vector<4x256xf32>
    %29 = arith.addf %28, %3 : vector<4x256xf32>
    %c0_6 = arith.constant 0 : index
    %c0_7 = arith.constant 0 : index
    %c0_8 = arith.constant 0 : index
    %30 = vector.load %arg6[%c0_6, %c0_7, %c0_8] : memref<2x4x256xf32, #tpu.memory_space<vmem>>, vector<1x4x256xf32>
    %31 = vector.shape_cast %30 : vector<1x4x256xf32> to vector<4x256xf32>
    %32 = vector.shape_cast %29 : vector<4x256xf32> to vector<1x4x256xf32>
    tpu.vector_store %arg6[%c0_6, %c0_7, %c0_8], %32 {strides = array<i32>} : memref<2x4x256xf32, #tpu.memory_space<vmem>>, vector<1x4x256xf32>,
    %c1 = arith.constant 1 : index
    %c0_9 = arith.constant 0 : index
    %c0_10 = arith.constant 0 : index
    %33 = vector.load %arg3[%c1, %c0_9, %c0_10] : memref<2x4x256xf32, #tpu.memory_space<vmem>>, vector<1x4x256xf32>
    %34 = vector.shape_cast %33 : vector<1x4x256xf32> to vector<4x256xf32>
    %35 = vector.extract_strided_slice %0 {offsets = [0, 0], sizes = [4, 1], strides = [1, 1]} : vector<4x4xf32> to vector<4x1xf32>
    %36 = vector.extract_strided_slice %34 {offsets = [0, 0], sizes = [1, 256], strides = [1, 1]} : vector<4x256xf32> to vector<1x256xf32>
    %37 = vector.broadcast %35 : vector<4x1xf32> to vector<4x256xf32>
    %38 = vector.broadcast %36 : vector<1x256xf32> to vector<4x256xf32>
    %39 = arith.mulf %37, %38 : vector<4x256xf32>
    %40 = vector.extract_strided_slice %0 {offsets = [0, 1], sizes = [4, 1], strides = [1, 1]} : vector<4x4xf32> to vector<4x1xf32>
    %41 = vector.extract_strided_slice %34 {offsets = [1, 0], sizes = [1, 256], strides = [1, 1]} : vector<4x256xf32> to vector<1x256xf32>
    %42 = vector.broadcast %40 : vector<4x1xf32> to vector<4x256xf32>
    %43 = vector.broadcast %41 : vector<1x256xf32> to vector<4x256xf32>
    %44 = arith.mulf %42, %43 : vector<4x256xf32>
    %45 = arith.addf %39, %44 : vector<4x256xf32>
    %46 = vector.extract_strided_slice %0 {offsets = [0, 2], sizes = [4, 1], strides = [1, 1]} : vector<4x4xf32> to vector<4x1xf32>
    %47 = vector.extract_strided_slice %34 {offsets = [2, 0], sizes = [1, 256], strides = [1, 1]} : vector<4x256xf32> to vector<1x256xf32>
    %48 = vector.broadcast %46 : vector<4x1xf32> to vector<4x256xf32>
    %49 = vector.broadcast %47 : vector<1x256xf32> to vector<4x256xf32>
    %50 = arith.mulf %48, %49 : vector<4x256xf32>
    %51 = arith.addf %45, %50 : vector<4x256xf32>
    %52 = vector.extract_strided_slice %0 {offsets = [0, 3], sizes = [4, 1], strides = [1, 1]} : vector<4x4xf32> to vector<4x1xf32>
    %53 = vector.extract_strided_slice %34 {offsets = [3, 0], sizes = [1, 256], strides = [1, 1]} : vector<4x256xf32> to vector<1x256xf32>
    %54 = vector.broadcast %52 : vector<4x1xf32> to vector<4x256xf32>
    %55 = vector.broadcast %53 : vector<1x256xf32> to vector<4x256xf32>
    %56 = arith.mulf %54, %55 : vector<4x256xf32>
    %57 = arith.addf %51, %56 : vector<4x256xf32>
    %58 = vector.broadcast %1 : vector<4x1xf32> to vector<4x256xf32>
    %59 = arith.addf %57, %58 : vector<4x256xf32>
    %60 = arith.addf %59, %34 : vector<4x256xf32>
    %c1_11 = arith.constant 1 : index
    %c0_12 = arith.constant 0 : index
    %c0_13 = arith.constant 0 : index
    %61 = vector.load %arg6[%c1_11, %c0_12, %c0_13] : memref<2x4x256xf32, #tpu.memory_space<vmem>>, vector<1x4x256xf32>
    %62 = vector.shape_cast %61 : vector<1x4x256xf32> to vector<4x256xf32>
    %63 = vector.shape_cast %60 : vector<4x256xf32> to vector<1x4x256xf32>
    tpu.vector_store %arg6[%c1_11, %c0_12, %c0_13], %63 {strides = array<i32>} : memref<2x4x256xf32, #tpu.memory_space<vmem>>, vector<1x4x256xf32>,
    return
  }
  func.func @transform_0(%arg0: i32, %arg1: i32, %arg2: i32) -> (i32, i32, i32) {
    %c0_i32 = arith.constant 0 : i32
    %c0_i32_0 = arith.constant 0 : i32
    return %arg1, %c0_i32, %arg2 : i32, i32, i32
  }
  func.func @transform_1(%arg0: i32, %arg1: i32, %arg2: i32) -> (i32, i32) {
    %c0_i32 = arith.constant 0 : i32
    %c0_i32_0 = arith.constant 0 : i32
    return %arg0, %c0_i32 : i32, i32
  }
  func.func @transform_2(%arg0: i32, %arg1: i32, %arg2: i32) -> (i32, i32) {
    %c0_i32 = arith.constant 0 : i32
    %c0_i32_0 = arith.constant 0 : i32
    return %arg0, %c0_i32 : i32, i32
  }
  func.func @transform_3(%arg0: i32, %arg1: i32, %arg2: i32) -> (i32, i32, i32) {
    %c0_i32 = arith.constant 0 : i32
    return %arg1, %arg0, %arg2 : i32, i32, i32
  }
}

</mosaic_0001>

<llo_original>
// kernel: tpu_custom_call.1
$region0: #{tpu_custom_call.1}
  #allocation0 [shape = 'u32[]', space=smem, size = 0x4, offset = 0x4, fixed_abs, tag = 'smem constant byte address 0x4 - core index']
  #allocation1 [shape = 'u32[144,128]{1,0:T(1,128)}', space=vmem, size = 0x12000, scoped, tag = 'internal scratch']
  %s0 = inlined_call_operand.hbm [shape: f32[2,4,256], index: 0, kind: input, shape index: {}]
  %s1 = inlined_call_operand.vmem [shape: f32[4,4], index: 1, kind: input, shape index: {}]
  %s2 = inlined_call_operand.vmem [shape: f32[4,1], index: 2, kind: input, shape index: {}]
  %s3 = inlined_call_operand.hbm [shape: f32[2,4,256], index: 3, kind: output, shape index: {}]
  %s4 = sld [smem:[#allocation0]]
  $region26: #{tpu_custom_call.1} parent=0
    _
  %s6 = ssub.s32 1, %s4
  %s7 = scalar_select 0, %s6, %s4
  $region1: #{tpu_custom_call.1} parent=0
    #allocation2 [shape = 'u8[8192]{0}', space=vmem, size = 0x2000, scoped, tag = 'input window, operand 0, single buffered']
    #allocation3 [shape = 's32[1]{0}', space=sflag, size = 0x4, scoped, tag = 'scoped memory for tpu_custom_call.1']
    #allocation4 [shape = 's32[1]{0}', space=sflag, size = 0x4, scoped, tag = 'scoped memory for tpu_custom_call.1']
    #allocation5 [shape = 'u8[8192]{0}', space=vmem, size = 0x2000, scoped, tag = 'output window, operand 0, single buffered']
    %8 = vsyncpa [#allocation3], 0
    %9 = vsyncpa [#allocation4], 0
    // Predicated region
    $region2: #{tpu_custom_call.1} parent=1 // pred_check
      _
    $region3: #{tpu_custom_call.1} parent=1 // pred_check_branch
      %11 = sbr.rel (0) target = $region5
    $region4: #{tpu_custom_call.1} parent=1 // pred_region
      %s13 = ssub.s32 256, 256
      %14 = vsyncadd [#allocation3], %s13
      %s15 = sshll.u32 [#allocation2], 4
      %s16 = int_to_ptr.vmem [resolvable:$true] %s15
      %21 = dma.hbm_to_vmem [thread:$0]  %s0, 256, %s16, [#allocation3], 128, 128, 8
    $region5: #{tpu_custom_call.1} parent=1 // pred_fallthru
      _
    // Predicated region
    $region6: #{tpu_custom_call.1} parent=1 // pred_check
      _
    $region7: #{tpu_custom_call.1} parent=1 // pred_check_branch
      %23 = sbr.rel (0) target = $region9
    $region8: #{tpu_custom_call.1} parent=1 // pred_region
      _
    $region9: #{tpu_custom_call.1} parent=1 // pred_fallthru
      _
    // Predicated region
    $region10: #{tpu_custom_call.1} parent=1 // pred_check
      _
    $region11: #{tpu_custom_call.1} parent=1 // pred_check_branch
      %25 = sbr.rel (0) target = $region13
    $region12: #{tpu_custom_call.1} parent=1 // pred_region
      _
    $region13: #{tpu_custom_call.1} parent=1 // pred_fallthru
      _
    // Predicated region
    $region14: #{tpu_custom_call.1} parent=1 // pred_check
      _
    $region15: #{tpu_custom_call.1} parent=1 // pred_check_branch
      %27 = sbr.rel (0) target = $region17
    $region16: #{tpu_custom_call.1} parent=1 // pred_region
      %28 = dma.done [#allocation3], 256
    $region17: #{tpu_custom_call.1} parent=1 // pred_fallthru
      _
    %v29 = vld [vmem:[%s1] sm:$0xf]
    %v30 = vld [vmem:[%s2] sm:$0xf]
    %v31 = vld [vmem:[#allocation2] sm:$0xff]
    %33 = vset.pattern.permute.xlu0 0
    %34 = vperm.xlu0 %33, %v29
    %v35 = vpop.permute.xlu0 %34
    %v38 = vlaneseq
    %v39 = vshrl.u32 %v38, 7
    %v40 = vsub.s32 0, %v39
    %v41 = vrot.slane %v31, %v40
    %v42 = vlaneseq
    %v43 = vshrl.u32 %v42, 7
    %v44 = vsub.s32 4, %v43
    %v45 = vrot.slane %v31, %v44
    %v48 = vlaneseq
    %v49 = vshrl.u32 %v48, 7
    %v50 = vsub.s32 0, %v49
    %v51 = vrot.slane %v41, %v50
    %v52 = vlaneseq
    %v53 = vshrl.u32 %v52, 7
    %v54 = vsub.s32 0, %v53
    %v55 = vrot.slane %v45, %v54
    %v56 = vmul.f32 %v35, %v51
    %v57 = vmul.f32 %v35, %v55
    %58 = vset.pattern.permute.xlu0 1
    %59 = vperm.xlu0 %58, %v29
    %v60 = vpop.permute.xlu0 %59
    %v62 = vlaneseq
    %v63 = vshrl.u32 %v62, 7
    %v64 = vsub.s32 1, %v63
    %v65 = vrot.slane %v31, %v64
    %v66 = vlaneseq
    %v67 = vshrl.u32 %v66, 7
    %v68 = vsub.s32 5, %v67
    %v69 = vrot.slane %v31, %v68
    %v72 = vlaneseq
    %v73 = vshrl.u32 %v72, 7
    %v74 = vsub.s32 1, %v73
    %v75 = vrot.slane %v65, %v74
    %v76 = vlaneseq
    %v77 = vshrl.u32 %v76, 7
    %v78 = vsub.s32 1, %v77
    %v79 = vrot.slane %v69, %v78
    %v80 = vmul.f32 %v60, %v75
    %v81 = vmul.f32 %v60, %v79
    %v82 = vadd.f32 %v56, %v80
    %v83 = vadd.f32 %v57, %v81
    %84 = vset.pattern.permute.xlu0 2
    %85 = vperm.xlu0 %84, %v29
    %v86 = vpop.permute.xlu0 %85
    %v88 = vlaneseq
    %v89 = vshrl.u32 %v88, 7
    %v90 = vsub.s32 2, %v89
    %v91 = vrot.slane %v31, %v90
    %v92 = vlaneseq
    %v93 = vshrl.u32 %v92, 7
    %v94 = vsub.s32 6, %v93
    %v95 = vrot.slane %v31, %v94
    %v98 = vlaneseq
    %v99 = vshrl.u32 %v98, 7
    %v100 = vsub.s32 2, %v99
    %v101 = vrot.slane %v91, %v100
    %v102 = vlaneseq
    %v103 = vshrl.u32 %v102, 7
    %v104 = vsub.s32 2, %v103
    %v105 = vrot.slane %v95, %v104
    %v106 = vmul.f32 %v86, %v101
    %v107 = vmul.f32 %v86, %v105
    %v108 = vadd.f32 %v82, %v106
    %v109 = vadd.f32 %v83, %v107
    %110 = vset.pattern.permute.xlu0 3
    %111 = vperm.xlu0 %110, %v29
    %v112 = vpop.permute.xlu0 %111
    %v114 = vlaneseq
    %v115 = vshrl.u32 %v114, 7
    %v116 = vsub.s32 3, %v115
    %v117 = vrot.slane %v31, %v116
    %v118 = vlaneseq
    %v119 = vshrl.u32 %v118, 7
    %v120 = vsub.s32 7, %v119
    %v121 = vrot.slane %v31, %v120
    %v124 = vlaneseq
    %v125 = vshrl.u32 %v124, 7
    %v126 = vsub.s32 3, %v125
    %v127 = vrot.slane %v117, %v126
    %v128 = vlaneseq
    %v129 = vshrl.u32 %v128, 7
    %v130 = vsub.s32 3, %v129
    %v131 = vrot.slane %v121, %v130
    %v132 = vmul.f32 %v112, %v127
    %v133 = vmul.f32 %v112, %v131
    %v134 = vadd.f32 %v108, %v132
    %v135 = vadd.f32 %v109, %v133
    %137 = vset.pattern.permute.xlu0 0
    %138 = vperm.xlu0 %137, %v30
    %v139 = vpop.permute.xlu0 %138
    %v141 = vadd.f32 %v134, %v139
    %v142 = vadd.f32 %v135, %v139
    %v143 = vcombine.high %v31, %v31
    %v145 = vadd.f32 %v141, %v31
    %v146 = vadd.f32 %v142, %v143
    %v149 = vcombine.low %v145, %v146
    %151 = vst [vmem:[#allocation5] sm:$0xff] %v149
    %s152 = scalar_lea.vmem [#allocation2], 8
    %v153 = vld [vmem:[%s152] sm:$0xff]
    %v155 = vlaneseq
    %v156 = vshrl.u32 %v155, 7
    %v157 = vsub.s32 0, %v156
    %v158 = vrot.slane %v153, %v157
    %v159 = vlaneseq
    %v160 = vshrl.u32 %v159, 7
    %v161 = vsub.s32 4, %v160
    %v162 = vrot.slane %v153, %v161
    %v165 = vlaneseq
    %v166 = vshrl.u32 %v165, 7
    %v167 = vsub.s32 0, %v166
    %v168 = vrot.slane %v158, %v167
    %v169 = vlaneseq
    %v170 = vshrl.u32 %v169, 7
    %v171 = vsub.s32 0, %v170
    %v172 = vrot.slane %v162, %v171
    %v173 = vmul.f32 %v35, %v168
    %v174 = vmul.f32 %v35, %v172
    %v175 = vlaneseq
    %v176 = vshrl.u32 %v175, 7
    %v177 = vsub.s32 1, %v176
    %v178 = vrot.slane %v153, %v177
    %v179 = vlaneseq
    %v180 = vshrl.u32 %v179, 7
    %v181 = vsub.s32 5, %v180
    %v182 = vrot.slane %v153, %v181
    %v185 = vlaneseq
    %v186 = vshrl.u32 %v185, 7
    %v187 = vsub.s32 1, %v186
    %v188 = vrot.slane %v178, %v187
    %v189 = vlaneseq
    %v190 = vshrl.u32 %v189, 7
    %v191 = vsub.s32 1, %v190
    %v192 = vrot.slane %v182, %v191
    %v193 = vmul.f32 %v60, %v188
    %v194 = vmul.f32 %v60, %v192
    %v195 = vadd.f32 %v173, %v193
    %v196 = vadd.f32 %v174, %v194
    %v197 = vlaneseq
    %v198 = vshrl.u32 %v197, 7
    %v199 = vsub.s32 2, %v198
    %v200 = vrot.slane %v153, %v199
    %v201 = vlaneseq
    %v202 = vshrl.u32 %v201, 7
    %v203 = vsub.s32 6, %v202
    %v204 = vrot.slane %v153, %v203
    %v207 = vlaneseq
    %v208 = vshrl.u32 %v207, 7
    %v209 = vsub.s32 2, %v208
    %v210 = vrot.slane %v200, %v209
    %v211 = vlaneseq
    %v212 = vshrl.u32 %v211, 7
    %v213 = vsub.s32 2, %v212
    %v214 = vrot.slane %v204, %v213
    %v215 = vmul.f32 %v86, %v210
    %v216 = vmul.f32 %v86, %v214
    %v217 = vadd.f32 %v195, %v215
    %v218 = vadd.f32 %v196, %v216
    %v219 = vlaneseq
    %v220 = vshrl.u32 %v219, 7
    %v221 = vsub.s32 3, %v220
    %v222 = vrot.slane %v153, %v221
    %v223 = vlaneseq
    %v224 = vshrl.u32 %v223, 7
    %v225 = vsub.s32 7, %v224
    %v226 = vrot.slane %v153, %v225
    %v229 = vlaneseq
    %v230 = vshrl.u32 %v229, 7
    %v231 = vsub.s32 3, %v230
    %v232 = vrot.slane %v222, %v231
    %v233 = vlaneseq
    %v234 = vshrl.u32 %v233, 7
    %v235 = vsub.s32 3, %v234
    %v236 = vrot.slane %v226, %v235
    %v237 = vmul.f32 %v112, %v232
    %v238 = vmul.f32 %v112, %v236
    %v239 = vadd.f32 %v217, %v237
    %v240 = vadd.f32 %v218, %v238
    %v241 = vadd.f32 %v239, %v139
    %v242 = vadd.f32 %v240, %v139
    %v243 = vcombine.high %v153, %v153
    %v245 = vadd.f32 %v241, %v153
    %v246 = vadd.f32 %v242, %v243
    %v249 = vcombine.low %v245, %v246
    %s251 = scalar_lea.vmem [#allocation5], 8
    %252 = vst [vmem:[%s251] sm:$0xff] %v249
    // Predicated region
    $region18: #{tpu_custom_call.1} parent=1 // pred_check
      _
    $region19: #{tpu_custom_call.1} parent=1 // pred_check_branch
      %254 = sbr.rel (0) target = $region21
    $region20: #{tpu_custom_call.1} parent=1 // pred_region
      %s256 = ssub.s32 256, 256
      %257 = vsyncadd [#allocation4], %s256
      %s258 = sshll.u32 [#allocation5], 4
      %s259 = int_to_ptr.vmem [resolvable:$true] %s258
      %264 = dma.vmem_to_hbm [thread:$0]  %s259, 256, %s3, [#allocation4], 128, 128, 8
    $region21: #{tpu_custom_call.1} parent=1 // pred_fallthru
      _
    // Predicated region
    $region22: #{tpu_custom_call.1} parent=1 // pred_check
      _
    $region23: #{tpu_custom_call.1} parent=1 // pred_check_branch
      %266 = sbr.rel (0) target = $region25
    $region24: #{tpu_custom_call.1} parent=1 // pred_region
      %267 = dma.done [#allocation4], 256
    $region25: #{tpu_custom_call.1} parent=1 // pred_fallthru
      _
    %268 = vsyncpa [#allocation3], 1
    %269 = vsyncpa [#allocation4], 1

</llo_original>
